<compile_context>
chip_gen: v7x
topology: tpu7x:2x2x1
jax: 0.10.0
libtpu: 0.0.40
codegen_flags: <defaults>
</compile_context>

<pallas_src>
import math

import jax
import jax.numpy as jnp
import numpy as np
from jax.experimental import pallas as pl
from jax.experimental.pallas import tpu as pltpu


def _make_fused_kernel(num_layers):
    """Kernel body for the whole attention_classfication stack.

    Ref layout: (x_ref, [wqkv, bqkv, wl, bl] * num_layers, o_ref).
    Per layer (PyTorch semantics):
        qkv = x @ [W_qk | W_v] + [b_qk | b_v]
        a   = sigmoid(qk) * v
        out = relu(a @ W_l + b_l)
    If W_l was stored zero-padded to (2m, m) (only when 2m % 128 == 0), the
    qk/v split uses a lane roll instead of two sub-vreg lane slices:
        a_full = sigmoid(qkv) * roll(qkv, m)      # [sig(qk)*v | sig(v)*qk]
        out    = relu(a_full @ W_l_pad + b_l)     # rows [m, 2m) of W_l_pad = 0
    """

    def kernel(*refs):
        x_ref = refs[0]
        o_ref = refs[-1]
        w_refs = refs[1:-1]

        h = x_ref[...].astype(jnp.float32)
        for l in range(num_layers):
            wqkv_ref, bqkv_ref, wl_ref, bl_ref = w_refs[4 * l:4 * l + 4]
            two_m = wqkv_ref.shape[1]
            m = two_m // 2
            mm_dtype = wqkv_ref.dtype            # f32 or bf16 MXU input dtype

            # Fused QK/V projection: one lane-dense (k, 2m) matmul, f32 acc.
            qkv = (
                jnp.dot(h.astype(mm_dtype), wqkv_ref[...],
                        preferred_element_type=jnp.float32)
                + bqkv_ref[...]
            )

            if wl_ref.shape[0] == two_m:
                # Roll path (2m % 128 == 0): XLU roll, no sub-vreg lane slices.
                a = jax.nn.sigmoid(qkv) * pltpu.roll(qkv, shift=m, axis=1)
            else:
                # Fallback for widths where 2m is not a multiple of 128.
                a = jax.nn.sigmoid(qkv[:, :m]) * qkv[:, m:]

            # Linear(., m) + ReLU, f32 epilogue.
            y = (
                jnp.dot(a.astype(mm_dtype), wl_ref[...],
                        preferred_element_type=jnp.float32)
                + bl_ref[...]
            )
            h = jnp.maximum(y, 0.0)

        # TODO(synk): lane-dense (batch*out_dim/128, 128) output repacking is
        # skipped - the (tb, out_dim) -> (tb*out_dim/128, 128) in-register
        # reshape is not reliably lowerable in Mosaic for out_dim < 128.
        o_ref[...] = h.astype(o_ref.dtype)

    return kernel


def _choose_batch_tile(batch, block_batch, align):
    """Rows per grid step: a multiple of `align` (or == batch), <= block_batch,
    and giving >= 2 grid steps when batch allows, so the "parallel" grid axis
    can be sharded across v7x's two TensorCores."""
    if batch < 2 * align:
        return batch
    tb = min(block_batch, -(-batch // 2))        # at least two grid steps
    return max(align, (tb // align) * align)


def _vmem_footprint_bytes(tb, in_dim, out_dim, out_dims, flat_params,
                          x_itemsize, out_itemsize):
    max_feat = max([in_dim] + [2 * m for m in out_dims])
    # Resident weights still get the default 2-deep pipeline buffering.
    weight_bytes = 2 * sum(int(a.size) * a.dtype.itemsize for a in flat_params)
    act_bytes = 2 * tb * in_dim * x_itemsize + 2 * tb * out_dim * out_itemsize
    interm_bytes = 6 * tb * max_feat * 4         # f32 per-layer temporaries
    return weight_bytes + act_bytes + interm_bytes + (2 << 20)


def attention_classfication_forward(x, params, *, block_batch=4096,
                                    out_dtype=jnp.float32):
    """Whole network as a single batch-tiled pallas_call with resident weights."""
    batch, in_dim = x.shape
    num_layers = len(params)
    out_dims = [int(layer[2].shape[1]) for layer in params]    # wl is (K2, m)
    out_dim = out_dims[-1]
    flat_params = [a for layer in params for a in layer]

    # Sublane alignment of the batch tile (8 for f32, 16 for bf16 streaming).
    itemsize_min = min(x.dtype.itemsize, jnp.dtype(out_dtype).itemsize)
    align = max(8, 32 // itemsize_min)
    tb = _choose_batch_tile(batch, block_batch, align)

    # Generation-aware VMEM budget (v5e/v6e: 128 MiB physical, v7x: 64 MiB).
    try:
        vmem_cap = int(getattr(pltpu.get_tpu_info(), "vmem_capacity_bytes",
                               64 << 20))
    except Exception:                            # pragma: no cover
        vmem_cap = 64 << 20
    vmem_budget = int(0.85 * vmem_cap)

    def footprint(t):
        return _vmem_footprint_bytes(t, in_dim, out_dim, out_dims, flat_params,
                                     x.dtype.itemsize,
                                     jnp.dtype(out_dtype).itemsize)

    # Shrink the batch tile (never silently clamp) until the footprint fits.
    while tb > align and footprint(tb) > vmem_budget:
        tb = max(align, ((tb // 2) // align) * align)
    if footprint(tb) > vmem_budget:
        raise ValueError(
            f"attention_classfication VMEM footprint {footprint(tb)} B exceeds "
            f"budget {vmem_budget} B even at the minimum batch tile; reduce "
            f"full_dim or use bf16 weights (matmul_dtype=jnp.bfloat16).")

    grid = (pl.cdiv(batch, tb),)

    def resident(arr):
        # Constant index_map -> DMA'd once, stays resident across grid steps.
        return pl.BlockSpec(arr.shape, lambda i, _n=arr.ndim: (0,) * _n)

    in_specs = [pl.BlockSpec((tb, in_dim), lambda i: (i, 0))]
    in_specs += [resident(a) for a in flat_params]
    out_specs = pl.BlockSpec((tb, out_dim), lambda i: (i, 0))

    # Advisory cost estimate so XLA schedules around this fused custom call.
    flops = 0
    transcendentals = 0
    for (wqkv, _bqkv, wl, _bl) in params:
        k_in, two_m = wqkv.shape
        m = two_m // 2
        flops += 2 * batch * k_in * two_m          # fused QK/V projection
        flops += 2 * batch * wl.shape[0] * m       # output Linear
        flops += 4 * batch * two_m                 # bias / sigmoid-mul / relu
        transcendentals += batch * (two_m if wl.shape[0] == two_m else m)
    bytes_accessed = (int(x.size) * x.dtype.itemsize
                      + batch * out_dim * jnp.dtype(out_dtype).itemsize
                      + sum(int(a.size) * a.dtype.itemsize for a in flat_params))
    cost = pl.CostEstimate(flops=int(flops),
                           transcendentals=int(transcendentals),
                           bytes_accessed=int(bytes_accessed))

    return pl.pallas_call(
        _make_fused_kernel(num_layers),
        out_shape=jax.ShapeDtypeStruct((batch, out_dim), out_dtype),
        grid=grid,
        in_specs=in_specs,
        out_specs=out_specs,
        compiler_params=pltpu.CompilerParams(
            dimension_semantics=("parallel",),     # shard batch tiles over TCs
            vmem_limit_bytes=vmem_budget,
        ),
        cost_estimate=cost,
    )(x, *flat_params)


def init_params(key, full_dim, *, matmul_dtype=jnp.float32):
    """Per-layer (W_qkv, b_qkv, W_l, b_l) in the kernel's layout.

    W_qkv = [W_qk | W_v] with shape (in, 2*out) so the kernel does one
    lane-dense x @ W_qkv matmul.  When 2*out is a multiple of 128, W_l is
    zero-padded to (2*out, out) so the kernel can use the roll path (no lane
    slices); the padded rows are zero so they contribute nothing.  Biases stay
    float32; weights may be bf16 (matmul_dtype) for the v6e/v7x MXU.  Init
    matches torch.nn.Linear's uniform(-1/sqrt(fan_in), +1/sqrt(fan_in)).
    """
    params = []
    for k_in, m_out in zip(full_dim[:-1], full_dim[1:]):
        key, kqk, kv_, kl, kbqk, kbv, kbl = jax.random.split(key, 7)
        b1 = 1.0 / math.sqrt(k_in)
        b2 = 1.0 / math.sqrt(m_out)
        wqk = jax.random.uniform(kqk, (k_in, m_out), jnp.float32, -b1, b1)
        wv = jax.random.uniform(kv_, (k_in, m_out), jnp.float32, -b1, b1)
        wl = jax.random.uniform(kl, (m_out, m_out), jnp.float32, -b2, b2)
        bqk = jax.random.uniform(kbqk, (1, m_out), jnp.float32, -b1, b1)
        bv = jax.random.uniform(kbv, (1, m_out), jnp.float32, -b1, b1)
        bl = jax.random.uniform(kbl, (1, m_out), jnp.float32, -b2, b2)

        wqkv = jnp.concatenate([wqk, wv], axis=1).astype(matmul_dtype)
        bqkv = jnp.concatenate([bqk, bv], axis=1)             # biases stay f32
        if (2 * m_out) % 128 == 0:
            wl = jnp.concatenate([wl, jnp.zeros_like(wl)], axis=0)
        params.append((wqkv, bqkv, wl.astype(matmul_dtype), bl))
    return params


def _reference_forward(x, params):
    """Pure-JAX reference of the PyTorch module (for the correctness check)."""
    h = x.astype(jnp.float32)
    for wqkv, bqkv, wl, bl in params:
        two_m = wqkv.shape[1]
        m = two_m // 2
        qkv = h @ wqkv.astype(jnp.float32) + bqkv
        a = jax.nn.sigmoid(qkv[:, :m]) * qkv[:, m:]
        wl_eff = wl[:m] if wl.shape[0] == two_m else wl
        h = jnp.maximum(a @ wl_eff.astype(jnp.float32) + bl, 0.0)
    return h


if __name__ == "__main__":
    key = jax.random.PRNGKey(0)
    kx, kp = jax.random.split(key)

    full_dim = [32, 64, 32]        # two layers: 32 -> 64, 64 -> 32
    batch = 8

    x = jax.random.normal(kx, (batch, full_dim[0]), jnp.float32)

    # float32 everywhere: tight correctness check against the pure-JAX reference.
    params = init_params(kp, full_dim, matmul_dtype=jnp.float32)
    out = attention_classfication_forward(x, params)
    jax.block_until_ready(out)
    assert out.shape == (batch, full_dim[-1])
    ref = _reference_forward(x, params)
    np.testing.assert_allclose(np.asarray(out), np.asarray(ref),
                               rtol=1e-5, atol=1e-5)

    # bf16 streaming path (v6e/v7x): bf16 weights + bf16 activations streamed,
    # f32 accumulation/epilogue and f32 output; looser tolerance by design.
    params_bf16 = init_params(kp, full_dim, matmul_dtype=jnp.bfloat16)
    x_bf16 = x.astype(jnp.bfloat16)
    out_bf16 = attention_classfication_forward(x_bf16, params_bf16)
    jax.block_until_ready(out_bf16)
    ref_bf16 = _reference_forward(x_bf16, params_bf16)
    np.testing.assert_allclose(np.asarray(out_bf16), np.asarray(ref_bf16),
                               rtol=5e-2, atol=5e-2)

    print("KERNEL_OK")
</pallas_src>

<mosaic_0001>
module attributes {stable_mosaic.version = 11 : i64} {
  func.func @kernel(%arg0: i32, %arg1: memref<8x32xf32, #tpu.memory_space<vmem>>, %arg2: memref<32x128xf32, #tpu.memory_space<vmem>>, %arg3: memref<1x128xf32, #tpu.memory_space<vmem>>, %arg4: memref<128x64xf32, #tpu.memory_space<vmem>>, %arg5: memref<1x64xf32, #tpu.memory_space<vmem>>, %arg6: memref<64x64xf32, #tpu.memory_space<vmem>>, %arg7: memref<1x64xf32, #tpu.memory_space<vmem>>, %arg8: memref<32x32xf32, #tpu.memory_space<vmem>>, %arg9: memref<1x32xf32, #tpu.memory_space<vmem>>, %arg10: memref<8x32xf32, #tpu.memory_space<vmem>>) attributes {dimension_semantics = [#tpu.dimension_semantics<parallel>], iteration_bounds = array<i64: 1>, scalar_prefetch = 0 : i64, scratch_operands = 0 : i64, tpu.core_type = #tpu.core_type<tc>, window_params = [{transform_indices = @transform_0, window_bounds = array<i64: 8, 32>}, {pipeline_mode = #tpu.pipeline_mode<synchronous>, transform_indices = @transform_1, window_bounds = array<i64: 32, 128>}, {pipeline_mode = #tpu.pipeline_mode<synchronous>, transform_indices = @transform_2, window_bounds = array<i64: 1, 128>}, {pipeline_mode = #tpu.pipeline_mode<synchronous>, transform_indices = @transform_3, window_bounds = array<i64: 128, 64>}, {pipeline_mode = #tpu.pipeline_mode<synchronous>, transform_indices = @transform_4, window_bounds = array<i64: 1, 64>}, {pipeline_mode = #tpu.pipeline_mode<synchronous>, transform_indices = @transform_5, window_bounds = array<i64: 64, 64>}, {pipeline_mode = #tpu.pipeline_mode<synchronous>, transform_indices = @transform_6, window_bounds = array<i64: 1, 64>}, {pipeline_mode = #tpu.pipeline_mode<synchronous>, transform_indices = @transform_7, window_bounds = array<i64: 32, 32>}, {pipeline_mode = #tpu.pipeline_mode<synchronous>, transform_indices = @transform_8, window_bounds = array<i64: 1, 32>}, {transform_indices = @transform_9, window_bounds = array<i64: 8, 32>}]} {
    %c0 = arith.constant 0 : index
    %c0_0 = arith.constant 0 : index
    %0 = vector.load %arg1[%c0, %c0_0] : memref<8x32xf32, #tpu.memory_space<vmem>>, vector<8x32xf32>
    %c0_1 = arith.constant 0 : index
    %c0_2 = arith.constant 0 : index
    %1 = vector.load %arg2[%c0_1, %c0_2] : memref<32x128xf32, #tpu.memory_space<vmem>>, vector<32x128xf32>
    %cst = arith.constant dense<0.000000e+00> : vector<8x128xf32>
    %2 = tpu.matmul %0, %1, %cst {dimension_numbers = #tpu.dot_dimension_numbers<[1], [0], [0], [1], [0, 0, 1, 1], [], []>} : vector<8x32xf32>, vector<32x128xf32>, vector<8x128xf32> -> vector<8x128xf32>
    %c0_3 = arith.constant 0 : index
    %c0_4 = arith.constant 0 : index
    %3 = vector.load %arg3[%c0_3, %c0_4] : memref<1x128xf32, #tpu.memory_space<vmem>>, vector<1x128xf32>
    %4 = vector.broadcast %3 : vector<1x128xf32> to vector<8x128xf32>
    %5 = arith.addf %2, %4 : vector<8x128xf32>
    %6 = arith.negf %5 : vector<8x128xf32>
    %7 = math.exp %6 : vector<8x128xf32>
    %cst_5 = arith.constant 1.000000e+00 : f32
    %8 = vector.broadcast %cst_5 : f32 to vector<8x128xf32>
    %9 = arith.addf %8, %7 : vector<8x128xf32>
    %10 = arith.divf %8, %9 : vector<8x128xf32>
    %c64_i32 = arith.constant 64 : i32
    %11 = tpu.dynamic_rotate %5 by %c64_i32 dim 1 : vector<8x128xf32>, i32 -> vector<8x128xf32>
    %12 = arith.mulf %10, %11 : vector<8x128xf32>
    %c0_6 = arith.constant 0 : index
    %c0_7 = arith.constant 0 : index
    %13 = vector.load %arg4[%c0_6, %c0_7] : memref<128x64xf32, #tpu.memory_space<vmem>>, vector<128x64xf32>
    %cst_8 = arith.constant dense<0.000000e+00> : vector<8x64xf32>
    %14 = tpu.matmul %12, %13, %cst_8 {dimension_numbers = #tpu.dot_dimension_numbers<[1], [0], [0], [1], [0, 0, 1, 1], [], []>} : vector<8x128xf32>, vector<128x64xf32>, vector<8x64xf32> -> vector<8x64xf32>
    %c0_9 = arith.constant 0 : index
    %c0_10 = arith.constant 0 : index
    %15 = vector.load %arg5[%c0_9, %c0_10] : memref<1x64xf32, #tpu.memory_space<vmem>>, vector<1x64xf32>
    %16 = vector.broadcast %15 : vector<1x64xf32> to vector<8x64xf32>
    %17 = arith.addf %14, %16 : vector<8x64xf32>
    %cst_11 = arith.constant 0.000000e+00 : f32
    %18 = vector.broadcast %cst_11 : f32 to vector<8x64xf32>
    %19 = arith.maximumf %17, %18 : vector<8x64xf32>
    %c0_12 = arith.constant 0 : index
    %c0_13 = arith.constant 0 : index
    %20 = vector.load %arg6[%c0_12, %c0_13] : memref<64x64xf32, #tpu.memory_space<vmem>>, vector<64x64xf32>
    %cst_14 = arith.constant dense<0.000000e+00> : vector<8x64xf32>
    %21 = tpu.matmul %19, %20, %cst_14 {dimension_numbers = #tpu.dot_dimension_numbers<[1], [0], [0], [1], [0, 0, 1, 1], [], []>} : vector<8x64xf32>, vector<64x64xf32>, vector<8x64xf32> -> vector<8x64xf32>
    %c0_15 = arith.constant 0 : index
    %c0_16 = arith.constant 0 : index
    %22 = vector.load %arg7[%c0_15, %c0_16] : memref<1x64xf32, #tpu.memory_space<vmem>>, vector<1x64xf32>
    %23 = vector.broadcast %22 : vector<1x64xf32> to vector<8x64xf32>
    %24 = arith.addf %21, %23 : vector<8x64xf32>
    %25 = vector.extract_strided_slice %24 {offsets = [0, 0], sizes = [8, 32], strides = [1, 1]} : vector<8x64xf32> to vector<8x32xf32>
    %26 = arith.negf %25 : vector<8x32xf32>
    %27 = math.exp %26 : vector<8x32xf32>
    %cst_17 = arith.constant 1.000000e+00 : f32
    %28 = vector.broadcast %cst_17 : f32 to vector<8x32xf32>
    %29 = arith.addf %28, %27 : vector<8x32xf32>
    %30 = arith.divf %28, %29 : vector<8x32xf32>
    %31 = vector.extract_strided_slice %24 {offsets = [0, 32], sizes = [8, 32], strides = [1, 1]} : vector<8x64xf32> to vector<8x32xf32>
    %32 = arith.mulf %30, %31 : vector<8x32xf32>
    %c0_18 = arith.constant 0 : index
    %c0_19 = arith.constant 0 : index
    %33 = vector.load %arg8[%c0_18, %c0_19] : memref<32x32xf32, #tpu.memory_space<vmem>>, vector<32x32xf32>
    %cst_20 = arith.constant dense<0.000000e+00> : vector<8x32xf32>
    %34 = tpu.matmul %32, %33, %cst_20 {dimension_numbers = #tpu.dot_dimension_numbers<[1], [0], [0], [1], [0, 0, 1, 1], [], []>} : vector<8x32xf32>, vector<32x32xf32>, vector<8x32xf32> -> vector<8x32xf32>
    %c0_21 = arith.constant 0 : index
    %c0_22 = arith.constant 0 : index
    %35 = vector.load %arg9[%c0_21, %c0_22] : memref<1x32xf32, #tpu.memory_space<vmem>>, vector<1x32xf32>
    %36 = vector.broadcast %35 : vector<1x32xf32> to vector<8x32xf32>
    %37 = arith.addf %34, %36 : vector<8x32xf32>
    %cst_23 = arith.constant 0.000000e+00 : f32
    %38 = vector.broadcast %cst_23 : f32 to vector<8x32xf32>
    %39 = arith.maximumf %37, %38 : vector<8x32xf32>
    %c0_24 = arith.constant 0 : index
    %c0_25 = arith.constant 0 : index
    %40 = vector.load %arg10[%c0_24, %c0_25] : memref<8x32xf32, #tpu.memory_space<vmem>>, vector<8x32xf32>
    tpu.vector_store %arg10[%c0_24, %c0_25], %39 {strides = array<i32>} : memref<8x32xf32, #tpu.memory_space<vmem>>, vector<8x32xf32>,
    return
  }
  func.func @transform_0(%arg0: i32) -> (i32, i32) {
    %c0_i32 = arith.constant 0 : i32
    %c0_i32_0 = arith.constant 0 : i32
    return %arg0, %c0_i32 : i32, i32
  }
  func.func @transform_1(%arg0: i32) -> (i32, i32) {
    %c0_i32 = arith.constant 0 : i32
    %c0_i32_0 = arith.constant 0 : i32
    %c0_i32_1 = arith.constant 0 : i32
    return %c0_i32, %c0_i32_0 : i32, i32
  }
  func.func @transform_2(%arg0: i32) -> (i32, i32) {
    %c0_i32 = arith.constant 0 : i32
    %c0_i32_0 = arith.constant 0 : i32
    %c0_i32_1 = arith.constant 0 : i32
    return %c0_i32, %c0_i32_0 : i32, i32
  }
  func.func @transform_3(%arg0: i32) -> (i32, i32) {
    %c0_i32 = arith.constant 0 : i32
    %c0_i32_0 = arith.constant 0 : i32
    %c0_i32_1 = arith.constant 0 : i32
    return %c0_i32, %c0_i32_0 : i32, i32
  }
  func.func @transform_4(%arg0: i32) -> (i32, i32) {
    %c0_i32 = arith.constant 0 : i32
    %c0_i32_0 = arith.constant 0 : i32
    %c0_i32_1 = arith.constant 0 : i32
    return %c0_i32, %c0_i32_0 : i32, i32
  }
  func.func @transform_5(%arg0: i32) -> (i32, i32) {
    %c0_i32 = arith.constant 0 : i32
    %c0_i32_0 = arith.constant 0 : i32
    %c0_i32_1 = arith.constant 0 : i32
    return %c0_i32, %c0_i32_0 : i32, i32
  }
  func.func @transform_6(%arg0: i32) -> (i32, i32) {
    %c0_i32 = arith.constant 0 : i32
    %c0_i32_0 = arith.constant 0 : i32
    %c0_i32_1 = arith.constant 0 : i32
    return %c0_i32, %c0_i32_0 : i32, i32
  }
  func.func @transform_7(%arg0: i32) -> (i32, i32) {
    %c0_i32 = arith.constant 0 : i32
    %c0_i32_0 = arith.constant 0 : i32
    %c0_i32_1 = arith.constant 0 : i32
    return %c0_i32, %c0_i32_0 : i32, i32
  }
  func.func @transform_8(%arg0: i32) -> (i32, i32) {
    %c0_i32 = arith.constant 0 : i32
    %c0_i32_0 = arith.constant 0 : i32
    %c0_i32_1 = arith.constant 0 : i32
    return %c0_i32, %c0_i32_0 : i32, i32
  }
  func.func @transform_9(%arg0: i32) -> (i32, i32) {
    %c0_i32 = arith.constant 0 : i32
    %c0_i32_0 = arith.constant 0 : i32
    return %arg0, %c0_i32 : i32, i32
  }
}

</mosaic_0001>

<llo_original>
// kernel: tpu_custom_call.1
$region0: #{tpu_custom_call.1}
  #allocation0 [shape = 'u32[]', space=smem, size = 0x4, offset = 0x4, fixed_abs, tag = 'smem constant byte address 0x4 - core index']
  #allocation1 [shape = 'u32[144,128]{1,0:T(1,128)}', space=vmem, size = 0x12000, scoped, tag = 'internal scratch']
  %s0 = inlined_call_operand.vmem [shape: f32[8,32], index: 0, kind: input, shape index: {}]
  %s1 = inlined_call_operand.vmem [shape: f32[32,128], index: 1, kind: input, shape index: {}]
  %s2 = inlined_call_operand.vmem [shape: f32[1,128], index: 2, kind: input, shape index: {}]
  %s3 = inlined_call_operand.vmem [shape: f32[128,64], index: 3, kind: input, shape index: {}]
  %s4 = inlined_call_operand.vmem [shape: f32[1,64], index: 4, kind: input, shape index: {}]
  %s5 = inlined_call_operand.vmem [shape: f32[64,64], index: 5, kind: input, shape index: {}]
  %s6 = inlined_call_operand.vmem [shape: f32[1,64], index: 6, kind: input, shape index: {}]
  %s7 = inlined_call_operand.vmem [shape: f32[32,32], index: 7, kind: input, shape index: {}]
  %s8 = inlined_call_operand.vmem [shape: f32[1,32], index: 8, kind: input, shape index: {}]
  %s9 = inlined_call_operand.hbm [shape: f32[8,32], index: 9, kind: output, shape index: {}]
  %s10 = sld [smem:[#allocation0]]
  $region46: #{tpu_custom_call.1} parent=0
    _
  %s12 = ssub.s32 1, %s10
  %s13 = scalar_select 0, %s12, %s10
  $region1: #{tpu_custom_call.1} parent=0
    #allocation2 [shape = 'u8[4096]{0}', space=vmem, size = 0x1000, scoped, tag = 'output window, operand 0, single buffered']
    #allocation3 [shape = 's32[1]{0}', space=sflag, size = 0x4, scoped, tag = 'scoped memory for tpu_custom_call.1']
    %14 = vsyncpa [#allocation3], 0
    // Predicated region
    $region2: #{tpu_custom_call.1} parent=1 // pred_check
      _
    $region3: #{tpu_custom_call.1} parent=1 // pred_check_branch
      %16 = sbr.rel (0) target = $region5
    $region4: #{tpu_custom_call.1} parent=1 // pred_region
      _
    $region5: #{tpu_custom_call.1} parent=1 // pred_fallthru
      _
    // Predicated region
    $region6: #{tpu_custom_call.1} parent=1 // pred_check
      _
    $region7: #{tpu_custom_call.1} parent=1 // pred_check_branch
      %18 = sbr.rel (0) target = $region9
    $region8: #{tpu_custom_call.1} parent=1 // pred_region
      _
    $region9: #{tpu_custom_call.1} parent=1 // pred_fallthru
      _
    // Predicated region
    $region10: #{tpu_custom_call.1} parent=1 // pred_check
      _
    $region11: #{tpu_custom_call.1} parent=1 // pred_check_branch
      %20 = sbr.rel (0) target = $region13
    $region12: #{tpu_custom_call.1} parent=1 // pred_region
      _
    $region13: #{tpu_custom_call.1} parent=1 // pred_fallthru
      _
    // Predicated region
    $region14: #{tpu_custom_call.1} parent=1 // pred_check
      _
    $region15: #{tpu_custom_call.1} parent=1 // pred_check_branch
      %22 = sbr.rel (0) target = $region17
    $region16: #{tpu_custom_call.1} parent=1 // pred_region
      _
    $region17: #{tpu_custom_call.1} parent=1 // pred_fallthru
      _
    // Predicated region
    $region18: #{tpu_custom_call.1} parent=1 // pred_check
      _
    $region19: #{tpu_custom_call.1} parent=1 // pred_check_branch
      %24 = sbr.rel (0) target = $region21
    $region20: #{tpu_custom_call.1} parent=1 // pred_region
      _
    $region21: #{tpu_custom_call.1} parent=1 // pred_fallthru
      _
    // Predicated region
    $region22: #{tpu_custom_call.1} parent=1 // pred_check
      _
    $region23: #{tpu_custom_call.1} parent=1 // pred_check_branch
      %26 = sbr.rel (0) target = $region25
    $region24: #{tpu_custom_call.1} parent=1 // pred_region
      _
    $region25: #{tpu_custom_call.1} parent=1 // pred_fallthru
      _
    // Predicated region
    $region26: #{tpu_custom_call.1} parent=1 // pred_check
      _
    $region27: #{tpu_custom_call.1} parent=1 // pred_check_branch
      %28 = sbr.rel (0) target = $region29
    $region28: #{tpu_custom_call.1} parent=1 // pred_region
      _
    $region29: #{tpu_custom_call.1} parent=1 // pred_fallthru
      _
    // Predicated region
    $region30: #{tpu_custom_call.1} parent=1 // pred_check
      _
    $region31: #{tpu_custom_call.1} parent=1 // pred_check_branch
      %30 = sbr.rel (0) target = $region33
    $region32: #{tpu_custom_call.1} parent=1 // pred_region
      _
    $region33: #{tpu_custom_call.1} parent=1 // pred_fallthru
      _
    // Predicated region
    $region34: #{tpu_custom_call.1} parent=1 // pred_check
      _
    $region35: #{tpu_custom_call.1} parent=1 // pred_check_branch
      %32 = sbr.rel (0) target = $region37
    $region36: #{tpu_custom_call.1} parent=1 // pred_region
      _
    $region37: #{tpu_custom_call.1} parent=1 // pred_fallthru
      _
    %v33 = vld [vmem:[%s0] sm:$0xff]
    %v34 = vld [vmem:[%s1] sm:$0xff]
    %v35 = vld [vmem:[%s1 + $0x8] sm:$0xff]
    %v36 = vld [vmem:[%s1 + $0x10] sm:$0xff]
    %v37 = vld [vmem:[%s1 + $0x18] sm:$0xff]
    %v38 = vld [vmem:[%s2] sm:$0x1]
    %v40 = vlaneseq
    %v41 = vshrl.u32 %v40, 7
    %v42 = vsub.s32 0, %v41
    %v43 = vrot.slane %v38, %v42
    %vm45 = vcmask 261120
    %v47 = vsel %vm45, %v33, 0
    %49 = vmatprep.subr.mxu0 0.0
    %50 = vmatpush1.msra.mxu0 %v34
    %51 = vmatprep.subr.mxu0 0.0
    %52 = vmatpush1.msra.mxu0 %v35
    %53 = vmatprep.subr.mxu0 0.0
    %54 = vmatpush1.msra.mxu0 %v36
    %55 = vmatprep.subr.mxu0 0.0
    %56 = vmatpush1.msra.mxu0 %v37
    %57 = vmatprep.subr.mxu0 0.0
    %58 = vmatpush1.msra.mxu0 0.0
    %59 = vmatprep.subr.mxu0 0.0
    %60 = vmatpush1.msra.mxu0 0.0
    %61 = vmatprep.subr.mxu0 0.0
    %62 = vmatpush1.msra.mxu0 0.0
    %63 = vmatprep.subr.mxu0 0.0
    %64 = vmatpush1.msra.mxu0 0.0
    %65 = vmatprep.subr.mxu0 0.0
    %66 = vmatpush1.msra.mxu0 0.0
    %67 = vmatprep.subr.mxu0 0.0
    %68 = vmatpush1.msra.mxu0 0.0
    %69 = vmatprep.subr.mxu0 0.0
    %70 = vmatpush1.msra.mxu0 0.0
    %71 = vmatprep.subr.mxu0 0.0
    %72 = vmatpush1.msra.mxu0 0.0
    %73 = vmatprep.subr.mxu0 0.0
    %74 = vmatpush1.msra.mxu0 0.0
    %75 = vmatprep.subr.mxu0 0.0
    %76 = vmatpush1.msra.mxu0 0.0
    %77 = vmatprep.subr.mxu0 0.0
    %78 = vmatpush1.msra.mxu0 0.0
    %79 = vmatprep.subr.mxu0 0.0
    %80 = vmatpush1.msra.mxu0 0.0
    %81 = vmatprep.subr.mxu0 0.0
    %82 = vmatpush1.msra.mxu0 0.0
    %83 = vmatprep.subr.mxu0 0.0
    %84 = vmatpush1.msra.mxu0 0.0
    %85 = vmatprep.subr.mxu0 0.0
    %86 = vmatpush1.msra.mxu0 0.0
    %87 = vmatprep.subr.mxu0 0.0
    %88 = vmatpush1.msra.mxu0 0.0
    %89 = vmatprep.subr.mxu0 0.0
    %90 = vmatpush1.msra.mxu0 0.0
    %91 = vmatprep.subr.mxu0 0.0
    %92 = vmatpush1.msra.mxu0 0.0
    %93 = vmatprep.subr.mxu0 0.0
    %94 = vmatpush1.msra.mxu0 0.0
    %95 = vmatprep.subr.mxu0 0.0
    %96 = vmatpush1.msra.mxu0 0.0
    %97 = vmatprep.subr.mxu0 0.0
    %98 = vmatpush1.msra.mxu0 0.0
    %99 = vmatprep.subr.mxu0 0.0
    %100 = vmatpush1.msra.mxu0 0.0
    %101 = vmatprep.subr.mxu0 0.0
    %102 = vmatpush1.msra.mxu0 0.0
    %103 = vmatprep.subr.mxu0 0.0
    %104 = vmatpush1.msra.mxu0 0.0
    %105 = vmatprep.subr.mxu0 0.0
    %106 = vmatpush1.msra.mxu0 0.0
    %107 = vmatprep.subr.mxu0 0.0
    %108 = vmatpush1.msra.mxu0 0.0
    %109 = vmatprep.subr.mxu0 0.0
    %110 = vmatpush1.msra.mxu0 0.0
    %111 = vmatprep.subr.mxu0 0.0
    %112 = vmatpush1.msra.mxu0 0.0
    %113 = vmatprep.mubr.f32.mxu0 0.0
    %114 = vmatmul.mubr.f32.gmra.mrb[0].mxu0 %v47
    %v115 = vpop.f32.mrb[0].mxu0
    %v116 = vadd.f32 %v43, %v115
    %v117 = vpop.f32.mrb[0].mxu0
    %118 = vdwg.mxu0
    %v119 = vxor.u32 %v116, 2147483648
    %v120 = vmul.f32 %v119, 1.442695
    %v121 = vpow.pop %v120
    %v122 = vadd.f32 %v121, 1.0
    %v123 = vrcp.pop %v122
    %v124 = vmul.f32 1.0, %v123
    %125 = vrot.lane.b32.xlu0 %v116, 64
    %v126 = vpop.permute.xlu0 %125
    %v127 = vmul.f32 %v124, %v126
    %v128 = vld [vmem:[%s3] sm:$0xff]
    %v129 = vld [vmem:[%s3 + $0x8] sm:$0xff]
    %v130 = vld [vmem:[%s3 + $0x10] sm:$0xff]
    %v131 = vld [vmem:[%s3 + $0x18] sm:$0xff]
    %v132 = vld [vmem:[%s3 + $0x20] sm:$0xff]
    %v133 = vld [vmem:[%s3 + $0x28] sm:$0xff]
    %v134 = vld [vmem:[%s3 + $0x30] sm:$0xff]
    %v135 = vld [vmem:[%s3 + $0x38] sm:$0xff]
    %v136 = vld [vmem:[%s3 + $0x40] sm:$0xff]
    %v137 = vld [vmem:[%s3 + $0x48] sm:$0xff]
    %v138 = vld [vmem:[%s3 + $0x50] sm:$0xff]
    %v139 = vld [vmem:[%s3 + $0x58] sm:$0xff]
    %v140 = vld [vmem:[%s3 + $0x60] sm:$0xff]
    %v141 = vld [vmem:[%s3 + $0x68] sm:$0xff]
    %v142 = vld [vmem:[%s3 + $0x70] sm:$0xff]
    %v143 = vld [vmem:[%s3 + $0x78] sm:$0xff]
    %v144 = vld [vmem:[%s4] sm:$0x1]
    %v146 = vlaneseq
    %v147 = vshrl.u32 %v146, 7
    %v148 = vsub.s32 0, %v147
    %v149 = vrot.slane %v144, %v148
    %151 = vmatprep.subr.mxu0 0.0
    %152 = vmatpush1.msra.mxu0 %v128
    %153 = vmatprep.subr.mxu0 0.0
    %154 = vmatpush1.msra.mxu0 %v129
    %155 = vmatprep.subr.mxu0 0.0
    %156 = vmatpush1.msra.mxu0 %v130
    %157 = vmatprep.subr.mxu0 0.0
    %158 = vmatpush1.msra.mxu0 %v131
    %159 = vmatprep.subr.mxu0 0.0
    %160 = vmatpush1.msra.mxu0 %v132
    %161 = vmatprep.subr.mxu0 0.0
    %162 = vmatpush1.msra.mxu0 %v133
    %163 = vmatprep.subr.mxu0 0.0
    %164 = vmatpush1.msra.mxu0 %v134
    %165 = vmatprep.subr.mxu0 0.0
    %166 = vmatpush1.msra.mxu0 %v135
    %167 = vmatprep.subr.mxu0 0.0
    %168 = vmatpush1.msra.mxu0 %v136
    %169 = vmatprep.subr.mxu0 0.0
    %170 = vmatpush1.msra.mxu0 %v137
    %171 = vmatprep.subr.mxu0 0.0
    %172 = vmatpush1.msra.mxu0 %v138
    %173 = vmatprep.subr.mxu0 0.0
    %174 = vmatpush1.msra.mxu0 %v139
    %175 = vmatprep.subr.mxu0 0.0
    %176 = vmatpush1.msra.mxu0 %v140
    %177 = vmatprep.subr.mxu0 0.0
    %178 = vmatpush1.msra.mxu0 %v141
    %179 = vmatprep.subr.mxu0 0.0
    %180 = vmatpush1.msra.mxu0 %v142
    %181 = vmatprep.subr.mxu0 0.0
    %182 = vmatpush1.msra.mxu0 %v143
    %183 = vmatprep.subr.mxu0 0.0
    %184 = vmatpush1.msra.mxu0 0.0
    %185 = vmatprep.subr.mxu0 0.0
    %186 = vmatpush1.msra.mxu0 0.0
    %187 = vmatprep.subr.mxu0 0.0
    %188 = vmatpush1.msra.mxu0 0.0
    %189 = vmatprep.subr.mxu0 0.0
    %190 = vmatpush1.msra.mxu0 0.0
    %191 = vmatprep.subr.mxu0 0.0
    %192 = vmatpush1.msra.mxu0 0.0
    %193 = vmatprep.subr.mxu0 0.0
    %194 = vmatpush1.msra.mxu0 0.0
    %195 = vmatprep.subr.mxu0 0.0
    %196 = vmatpush1.msra.mxu0 0.0
    %197 = vmatprep.subr.mxu0 0.0
    %198 = vmatpush1.msra.mxu0 0.0
    %199 = vmatprep.subr.mxu0 0.0
    %200 = vmatpush1.msra.mxu0 0.0
    %201 = vmatprep.subr.mxu0 0.0
    %202 = vmatpush1.msra.mxu0 0.0
    %203 = vmatprep.subr.mxu0 0.0
    %204 = vmatpush1.msra.mxu0 0.0
    %205 = vmatprep.subr.mxu0 0.0
    %206 = vmatpush1.msra.mxu0 0.0
    %207 = vmatprep.subr.mxu0 0.0
    %208 = vmatpush1.msra.mxu0 0.0
    %209 = vmatprep.subr.mxu0 0.0
    %210 = vmatpush1.msra.mxu0 0.0
    %211 = vmatprep.subr.mxu0 0.0
    %212 = vmatpush1.msra.mxu0 0.0
    %213 = vmatprep.subr.mxu0 0.0
    %214 = vmatpush1.msra.mxu0 0.0
    %215 = vmatprep.mubr.f32.mxu0 0.0
    %216 = vmatmul.mubr.f32.gmra.mrb[0].mxu0 %v127
    %v217 = vpop.f32.mrb[0].mxu0
    %v218 = vadd.f32 %v149, %v217
    %v219 = vpop.f32.mrb[0].mxu0
    %220 = vdwg.mxu0
    %v221 = vmax.f32 %v218, 0.0
    %v222 = vld [vmem:[%s5] sm:$0xff]
    %v223 = vld [vmem:[%s5 + $0x8] sm:$0xff]
    %v224 = vld [vmem:[%s5 + $0x10] sm:$0xff]
    %v225 = vld [vmem:[%s5 + $0x18] sm:$0xff]
    %v226 = vld [vmem:[%s5 + $0x20] sm:$0xff]
    %v227 = vld [vmem:[%s5 + $0x28] sm:$0xff]
    %v228 = vld [vmem:[%s5 + $0x30] sm:$0xff]
    %v229 = vld [vmem:[%s5 + $0x38] sm:$0xff]
    %v230 = vld [vmem:[%s6] sm:$0x1]
    %v232 = vlaneseq
    %v233 = vshrl.u32 %v232, 7
    %v234 = vsub.s32 0, %v233
    %v235 = vrot.slane %v230, %v234
    %vm237 = vcmask 523264
    %v239 = vsel %vm237, %v221, 0
    %241 = vmatprep.subr.mxu0 0.0
    %242 = vmatpush1.msra.mxu0 %v222
    %243 = vmatprep.subr.mxu0 0.0
    %244 = vmatpush1.msra.mxu0 %v223
    %245 = vmatprep.subr.mxu0 0.0
    %246 = vmatpush1.msra.mxu0 %v224
    %247 = vmatprep.subr.mxu0 0.0
    %248 = vmatpush1.msra.mxu0 %v225
    %249 = vmatprep.subr.mxu0 0.0
    %250 = vmatpush1.msra.mxu0 %v226
    %251 = vmatprep.subr.mxu0 0.0
    %252 = vmatpush1.msra.mxu0 %v227
    %253 = vmatprep.subr.mxu0 0.0
    %254 = vmatpush1.msra.mxu0 %v228
    %255 = vmatprep.subr.mxu0 0.0
    %256 = vmatpush1.msra.mxu0 %v229
    %257 = vmatprep.subr.mxu0 0.0
    %258 = vmatpush1.msra.mxu0 0.0
    %259 = vmatprep.subr.mxu0 0.0
    %260 = vmatpush1.msra.mxu0 0.0
    %261 = vmatprep.subr.mxu0 0.0
    %262 = vmatpush1.msra.mxu0 0.0
    %263 = vmatprep.subr.mxu0 0.0
    %264 = vmatpush1.msra.mxu0 0.0
    %265 = vmatprep.subr.mxu0 0.0
    %266 = vmatpush1.msra.mxu0 0.0
    %267 = vmatprep.subr.mxu0 0.0
    %268 = vmatpush1.msra.mxu0 0.0
    %269 = vmatprep.subr.mxu0 0.0
    %270 = vmatpush1.msra.mxu0 0.0
    %271 = vmatprep.subr.mxu0 0.0
    %272 = vmatpush1.msra.mxu0 0.0
    %273 = vmatprep.subr.mxu0 0.0
    %274 = vmatpush1.msra.mxu0 0.0
    %275 = vmatprep.subr.mxu0 0.0
    %276 = vmatpush1.msra.mxu0 0.0
    %277 = vmatprep.subr.mxu0 0.0
    %278 = vmatpush1.msra.mxu0 0.0
    %279 = vmatprep.subr.mxu0 0.0
    %280 = vmatpush1.msra.mxu0 0.0
    %281 = vmatprep.subr.mxu0 0.0
    %282 = vmatpush1.msra.mxu0 0.0
    %283 = vmatprep.subr.mxu0 0.0
    %284 = vmatpush1.msra.mxu0 0.0
    %285 = vmatprep.subr.mxu0 0.0
    %286 = vmatpush1.msra.mxu0 0.0
    %287 = vmatprep.subr.mxu0 0.0
    %288 = vmatpush1.msra.mxu0 0.0
    %289 = vmatprep.subr.mxu0 0.0
    %290 = vmatpush1.msra.mxu0 0.0
    %291 = vmatprep.subr.mxu0 0.0
    %292 = vmatpush1.msra.mxu0 0.0
    %293 = vmatprep.subr.mxu0 0.0
    %294 = vmatpush1.msra.mxu0 0.0
    %295 = vmatprep.subr.mxu0 0.0
    %296 = vmatpush1.msra.mxu0 0.0
    %297 = vmatprep.subr.mxu0 0.0
    %298 = vmatpush1.msra.mxu0 0.0
    %299 = vmatprep.subr.mxu0 0.0
    %300 = vmatpush1.msra.mxu0 0.0
    %301 = vmatprep.subr.mxu0 0.0
    %302 = vmatpush1.msra.mxu0 0.0
    %303 = vmatprep.subr.mxu0 0.0
    %304 = vmatpush1.msra.mxu0 0.0
    %305 = vmatprep.mubr.f32.mxu0 0.0
    %306 = vmatmul.mubr.f32.gmra.mrb[0].mxu0 %v239
    %v307 = vpop.f32.mrb[0].mxu0
    %v308 = vadd.f32 %v235, %v307
    %v309 = vpop.f32.mrb[0].mxu0
    %310 = vdwg.mxu0
    %v311 = vxor.u32 %v308, 2147483648
    %v312 = vmul.f32 %v311, 1.442695
    %v313 = vpow.pop %v312
    %v314 = vadd.f32 %v313, 1.0
    %v315 = vrcp.pop %v314
    %v316 = vmul.f32 1.0, %v315
    %318 = vrot.lane.b32.xlu0 %v308, 96
    %v319 = vpop.permute.xlu0 %318
    %v321 = vmul.f32 %v316, %v319
    %v322 = vld [vmem:[%s7] sm:$0xff]
    %v323 = vld [vmem:[%s7 + $0x8] sm:$0xff]
    %v324 = vld [vmem:[%s7 + $0x10] sm:$0xff]
    %v325 = vld [vmem:[%s7 + $0x18] sm:$0xff]
    %v326 = vld [vmem:[%s8] sm:$0x1]
    %v328 = vlaneseq
    %v329 = vshrl.u32 %v328, 7
    %v330 = vsub.s32 0, %v329
    %v331 = vrot.slane %v326, %v330
    %v334 = vsel %vm45, %v321, 0
    %336 = vmatprep.subr.mxu0 0.0
    %337 = vmatpush1.msra.mxu0 %v322
    %338 = vmatprep.subr.mxu0 0.0
    %339 = vmatpush1.msra.mxu0 %v323
    %340 = vmatprep.subr.mxu0 0.0
    %341 = vmatpush1.msra.mxu0 %v324
    %342 = vmatprep.subr.mxu0 0.0
    %343 = vmatpush1.msra.mxu0 %v325
    %344 = vmatprep.subr.mxu0 0.0
    %345 = vmatpush1.msra.mxu0 0.0
    %346 = vmatprep.subr.mxu0 0.0
    %347 = vmatpush1.msra.mxu0 0.0
    %348 = vmatprep.subr.mxu0 0.0
    %349 = vmatpush1.msra.mxu0 0.0
    %350 = vmatprep.subr.mxu0 0.0
    %351 = vmatpush1.msra.mxu0 0.0
    %352 = vmatprep.subr.mxu0 0.0
    %353 = vmatpush1.msra.mxu0 0.0
    %354 = vmatprep.subr.mxu0 0.0
    %355 = vmatpush1.msra.mxu0 0.0
    %356 = vmatprep.subr.mxu0 0.0
    %357 = vmatpush1.msra.mxu0 0.0
    %358 = vmatprep.subr.mxu0 0.0
    %359 = vmatpush1.msra.mxu0 0.0
    %360 = vmatprep.subr.mxu0 0.0
    %361 = vmatpush1.msra.mxu0 0.0
    %362 = vmatprep.subr.mxu0 0.0
    %363 = vmatpush1.msra.mxu0 0.0
    %364 = vmatprep.subr.mxu0 0.0
    %365 = vmatpush1.msra.mxu0 0.0
    %366 = vmatprep.subr.mxu0 0.0
    %367 = vmatpush1.msra.mxu0 0.0
    %368 = vmatprep.subr.mxu0 0.0
    %369 = vmatpush1.msra.mxu0 0.0
    %370 = vmatprep.subr.mxu0 0.0
    %371 = vmatpush1.msra.mxu0 0.0
    %372 = vmatprep.subr.mxu0 0.0
    %373 = vmatpush1.msra.mxu0 0.0
    %374 = vmatprep.subr.mxu0 0.0
    %375 = vmatpush1.msra.mxu0 0.0
    %376 = vmatprep.subr.mxu0 0.0
    %377 = vmatpush1.msra.mxu0 0.0
    %378 = vmatprep.subr.mxu0 0.0
    %379 = vmatpush1.msra.mxu0 0.0
    %380 = vmatprep.subr.mxu0 0.0
    %381 = vmatpush1.msra.mxu0 0.0
    %382 = vmatprep.subr.mxu0 0.0
    %383 = vmatpush1.msra.mxu0 0.0
    %384 = vmatprep.subr.mxu0 0.0
    %385 = vmatpush1.msra.mxu0 0.0
    %386 = vmatprep.subr.mxu0 0.0
    %387 = vmatpush1.msra.mxu0 0.0
    %388 = vmatprep.subr.mxu0 0.0
    %389 = vmatpush1.msra.mxu0 0.0
    %390 = vmatprep.subr.mxu0 0.0
    %391 = vmatpush1.msra.mxu0 0.0
    %392 = vmatprep.subr.mxu0 0.0
    %393 = vmatpush1.msra.mxu0 0.0
    %394 = vmatprep.subr.mxu0 0.0
    %395 = vmatpush1.msra.mxu0 0.0
    %396 = vmatprep.subr.mxu0 0.0
    %397 = vmatpush1.msra.mxu0 0.0
    %398 = vmatprep.subr.mxu0 0.0
    %399 = vmatpush1.msra.mxu0 0.0
    %400 = vmatprep.mubr.f32.mxu0 0.0
    %401 = vmatmul.mubr.f32.gmra.mrb[0].mxu0 %v334
    %v402 = vpop.f32.mrb[0].mxu0
    %v403 = vadd.f32 %v331, %v402
    %v404 = vpop.f32.mrb[0].mxu0
    %405 = vdwg.mxu0
    %v406 = vmax.f32 %v403, 0.0
    %407 = vst.msk [vmem:[#allocation2] sm:$0xff] %vm45, %v406
    // Predicated region
    $region38: #{tpu_custom_call.1} parent=1 // pred_check
      _
    $region39: #{tpu_custom_call.1} parent=1 // pred_check_branch
      %409 = sbr.rel (0) target = $region41
    $region40: #{tpu_custom_call.1} parent=1 // pred_region
      %s411 = ssub.s32 128, 128
      %412 = vsyncadd [#allocation3], %s411
      %s414 = sshll.u32 [#allocation2], 4
      %s415 = int_to_ptr.vmem [resolvable:$true] %s414
      %417 = dma.vmem_to_hbm [thread:$0]  %s415, 128, %s9, [#allocation3]
    $region41: #{tpu_custom_call.1} parent=1 // pred_fallthru
      _
    // Predicated region
    $region42: #{tpu_custom_call.1} parent=1 // pred_check
      _
    $region43: #{tpu_custom_call.1} parent=1 // pred_check_branch
      %419 = sbr.rel (0) target = $region45
    $region44: #{tpu_custom_call.1} parent=1 // pred_region
      %420 = dma.done [#allocation3], 128
    $region45: #{tpu_custom_call.1} parent=1 // pred_fallthru
      _
    %421 = vsyncpa [#allocation3], 1

</llo_original>
